<compile_context>
chip_gen: v6e
topology: v6e:2x2x1
jax: 0.10.0
libtpu: 0.0.40
codegen_flags: <defaults>
</compile_context>

<pallas_src>
import functools
import math

import jax
import jax.numpy as jnp
from jax.experimental import pallas as pl
from jax.experimental.pallas import tpu as pltpu


# --------------------------------------------------------------------------- #
# Fused single-pass kernel: whole packed input resident in VMEM.
# --------------------------------------------------------------------------- #
def _fused_kernel(x_ref, gamma_ref, beta_ref, o_ref, *, k, n_valid, eps):
    x = x_ref[...].astype(jnp.float32)                 # (R, CW)
    cw = x.shape[-1]
    c = cw // k

    psum = jnp.sum(x, axis=0, keepdims=True)           # (1, CW)
    psq = jnp.sum(x * x, axis=0, keepdims=True)        # (1, CW)
    if k > 1:
        # Fold the k lane-packed copies of each feature back together.
        ps = psum[:, 0:c]
        pq = psq[:, 0:c]
        for i in range(1, k):
            ps = ps + psum[:, i * c:(i + 1) * c]
            pq = pq + psq[:, i * c:(i + 1) * c]
        psum, psq = ps, pq                              # (1, C)

    inv_n = jnp.float32(1.0 / n_valid)
    mean = psum * inv_n
    # TODO(synk): shifted / Welford variance if |mean| >> std (cancellation).
    var = jnp.maximum(psq * inv_n - mean * mean, 0.0)
    invstd = jax.lax.rsqrt(var + jnp.float32(eps))
    scale = gamma_ref[...].astype(jnp.float32) * invstd     # (1, C)
    shift = beta_ref[...].astype(jnp.float32) - mean * scale
    if k > 1:
        scale = jnp.concatenate([scale] * k, axis=1)         # (1, CW)
        shift = jnp.concatenate([shift] * k, axis=1)
    o_ref[...] = (x * scale + shift).astype(o_ref.dtype)


# --------------------------------------------------------------------------- #
# Pass 1 (streaming path): per-feature sum / sum-of-squares with a resident
# (8, CW) accumulator per parallel slice; ragged tail masked in-kernel.
# --------------------------------------------------------------------------- #
def _make_stats_kernel(*, tile_rows, chunk_rows, cw, rows_valid, steps, ragged):
    n_chunks = tile_rows // chunk_rows

    def kernel(x_ref, sum_ref, sumsq_ref):
        @pl.when(pl.program_id(1) == 0)
        def _init():
            sum_ref[...] = jnp.zeros_like(sum_ref)
            sumsq_ref[...] = jnp.zeros_like(sumsq_ref)

        block_start = (pl.program_id(0) * steps + pl.program_id(1)) * tile_rows

        def body(ci, carry):
            base = pl.multiple_of(ci * chunk_rows, chunk_rows)
            xc = x_ref[pl.ds(base, chunk_rows), :].astype(jnp.float32)
            if ragged:
                rows = (jax.lax.broadcasted_iota(jnp.int32, (chunk_rows, cw), 0)
                        + block_start + base)
                xc = jnp.where(rows < rows_valid, xc, 0.0)
            xg = xc.reshape(chunk_rows // 8, 8, cw)
            sum_ref[...] += jnp.sum(xg, axis=0)
            sumsq_ref[...] += jnp.sum(xg * xg, axis=0)
            return carry

        jax.lax.fori_loop(0, n_chunks, body, 0, unroll=n_chunks <= 8)

    return kernel


# --------------------------------------------------------------------------- #
# Pass 2 (streaming path): y = x * scale + shift.
# --------------------------------------------------------------------------- #
def _norm_kernel(x_ref, scale_ref, shift_ref, o_ref):
    x = x_ref[...].astype(jnp.float32)
    o_ref[...] = (x * scale_ref[...] + shift_ref[...]).astype(o_ref.dtype)


@functools.partial(jax.jit, static_argnames=("eps", "force_two_pass"))
def batch_norm_1d_pallas(x, gamma, beta, *, eps=1e-5, force_two_pass=False):
    """BatchNorm1d forward (training-mode batch stats) over the last dim of x."""
    orig_shape = x.shape
    C = orig_shape[-1]
    xf = x.reshape(-1, C)
    N = xf.shape[0]
    itemsize = jnp.dtype(x.dtype).itemsize

    # ---- lane-dense packing (free reshape of the contiguous [N, C] view) ----
    if C % 128 == 0:
        k = 1
    else:
        k = math.lcm(C, 128) // C
        if k * C > 1024 or N % k != 0:
            k = 1   # TODO(synk): optionally pad C to a lane multiple for odd C.
    CW = k * C
    rows_packed = N // k
    xp = xf if k == 1 else xf.reshape(rows_packed, CW)

    # ---- per-generation knobs ------------------------------------------------
    try:
        kind = jax.devices()[0].device_kind.lower()
    except Exception:  # pragma: no cover - defensive
        kind = ""
    is_v7 = "v7" in kind
    vmem_limit = (48 if is_v7 else 64) * 1024 * 1024

    gamma2 = gamma.reshape(1, C).astype(jnp.float32)
    beta2 = beta.reshape(1, C).astype(jnp.float32)

    # ---- fused single-pass fast path (input resident in VMEM) ---------------
    x_bytes = rows_packed * CW * itemsize
    f32_bytes = rows_packed * CW * 4
    fits_vmem = (2 * x_bytes + 2 * f32_bytes) <= (vmem_limit - (4 << 20))
    if fits_vmem and k <= 16 and not force_two_pass:
        yp = pl.pallas_call(
            functools.partial(_fused_kernel, k=k, n_valid=N, eps=eps),
            out_shape=jax.ShapeDtypeStruct((rows_packed, CW), x.dtype),
            grid=(1,),
            in_specs=[
                pl.BlockSpec((rows_packed, CW), lambda i: (0, 0)),
                pl.BlockSpec((1, C), lambda i: (0, 0)),
                pl.BlockSpec((1, C), lambda i: (0, 0)),
            ],
            out_specs=pl.BlockSpec((rows_packed, CW), lambda i: (0, 0)),
            compiler_params=pltpu.CompilerParams(vmem_limit_bytes=vmem_limit),
        )(xp, gamma2, beta2)
        return yp.reshape(N, C).reshape(orig_shape)

    # ---- streaming two-pass path --------------------------------------------
    sublane = {4: 8, 2: 16, 1: 32}.get(itemsize, 8)

    # Chunk used for in-kernel accumulation (~512 KiB of f32 per chunk).
    chunk_rows = (512 * 1024) // (CW * 4)
    chunk_rows = max(sublane, (chunk_rows // sublane) * sublane)
    chunk_rows = min(chunk_rows, max(sublane, pl.cdiv(rows_packed, sublane) * sublane))

    # ~4 MiB tiles of input dtype, a multiple of chunk_rows.
    target_bytes = 4 * 1024 * 1024
    chunks_per_tile = max(1, target_bytes // (chunk_rows * CW * itemsize))
    tile_rows = chunk_rows * chunks_per_tile
    tile_rows = min(tile_rows, pl.cdiv(rows_packed, chunk_rows) * chunk_rows)

    total_blocks = pl.cdiv(rows_packed, tile_rows)
    P = 2 if (is_v7 and total_blocks >= 2) else 1   # megacore split only on v7x
    steps = pl.cdiv(total_blocks, P)
    ragged = (total_blocks * tile_rows != rows_packed) or (P * steps != total_blocks)

    stats_kernel = _make_stats_kernel(
        tile_rows=tile_rows, chunk_rows=chunk_rows, cw=CW,
        rows_valid=rows_packed, steps=steps, ragged=ragged)

    def _x_index(p, j):
        # Clamp so an (odd-split) trailing block re-reads the last real block;
        # its contribution is masked to zero inside the kernel.
        return (jnp.minimum(p * steps + j, total_blocks - 1), 0)

    sums, sumsqs = pl.pallas_call(
        stats_kernel,
        out_shape=(
            jax.ShapeDtypeStruct((P * 8, CW), jnp.float32),
            jax.ShapeDtypeStruct((P * 8, CW), jnp.float32),
        ),
        grid_spec=pltpu.PrefetchScalarGridSpec(
            num_scalar_prefetch=0,
            grid=(P, steps),
            in_specs=[pl.BlockSpec((tile_rows, CW), _x_index)],
            out_specs=(
                pl.BlockSpec((8, CW), lambda p, j: (p, 0)),
                pl.BlockSpec((8, CW), lambda p, j: (p, 0)),
            ),
        ),
        compiler_params=pltpu.CompilerParams(
            dimension_semantics=("parallel", "arbitrary"),
            vmem_limit_bytes=vmem_limit,
        ),
    )(xp)

    # ---- glue (fused by XLA inside this jit): fold affine into scale/shift ---
    sum_c = sums.reshape(-1, C).sum(axis=0)
    sumsq_c = sumsqs.reshape(-1, C).sum(axis=0)
    inv_n = jnp.float32(1.0 / N)
    mean = sum_c * inv_n
    var = jnp.maximum(sumsq_c * inv_n - mean * mean, 0.0)
    # TODO(synk): Welford-style partial combination if |mean| >> std.
    invstd = jax.lax.rsqrt(var + jnp.float32(eps))
    scale_c = gamma.astype(jnp.float32) * invstd
    shift_c = beta.astype(jnp.float32) - mean * scale_c
    scale = jnp.tile(scale_c.reshape(1, C), (1, k))   # packed col r*C+c -> feature c
    shift = jnp.tile(shift_c.reshape(1, C), (1, k))

    yp = pl.pallas_call(
        _norm_kernel,
        out_shape=jax.ShapeDtypeStruct((rows_packed, CW), x.dtype),
        grid_spec=pltpu.PrefetchScalarGridSpec(
            num_scalar_prefetch=0,
            grid=(total_blocks,),
            in_specs=[
                pl.BlockSpec((tile_rows, CW), lambda i: (i, 0)),
                pl.BlockSpec((1, CW), lambda i: (0, 0)),
                pl.BlockSpec((1, CW), lambda i: (0, 0)),
            ],
            out_specs=pl.BlockSpec((tile_rows, CW), lambda i: (i, 0)),
        ),
        compiler_params=pltpu.CompilerParams(
            dimension_semantics=("parallel",),
            vmem_limit_bytes=vmem_limit,
        ),
    )(xp, scale, shift)

    return yp.reshape(N, C).reshape(orig_shape)


def reference_batch_norm(x, gamma, beta, eps=1e-5):
    """Pure-JAX reference (PyTorch BatchNorm1d training-mode semantics)."""
    C = x.shape[-1]
    xf = x.reshape(-1, C).astype(jnp.float32)
    mean = xf.mean(axis=0, keepdims=True)
    var = ((xf - mean) ** 2).mean(axis=0, keepdims=True)
    y = (xf - mean) / jnp.sqrt(var + eps) * gamma.reshape(1, C) + beta.reshape(1, C)
    return y.reshape(x.shape).astype(x.dtype)


if __name__ == "__main__":
    key = jax.random.PRNGKey(0)
    kx, kg, kb, kx2 = jax.random.split(key, 4)

    # Small shapes consistent with the module: x has shape [*, feature_dim].
    B, T, C = 2, 8, 32
    x = jax.random.normal(kx, (B, T, C), dtype=jnp.float32)
    gamma = 1.0 + 0.1 * jax.random.normal(kg, (C,), dtype=jnp.float32)
    beta = 0.1 * jax.random.normal(kb, (C,), dtype=jnp.float32)

    # 1) Fused single-pass path (packed input fits in VMEM).
    y = jax.block_until_ready(batch_norm_1d_pallas(x, gamma, beta))
    y_ref = reference_batch_norm(x, gamma, beta)
    assert y.shape == x.shape
    assert jnp.allclose(y, y_ref, atol=1e-4, rtol=1e-4), "fused path mismatch"

    # 2) Streaming two-pass path with a ragged row count (no host padding).
    x2 = jax.random.normal(kx2, (8, 125, C), dtype=jnp.float32)   # N = 1000
    y2 = jax.block_until_ready(
        batch_norm_1d_pallas(x2, gamma, beta, force_two_pass=True))
    assert jnp.allclose(y2, reference_batch_norm(x2, gamma, beta),
                        atol=1e-4, rtol=1e-4), "two-pass path mismatch"

    print("KERNEL_OK")
</pallas_src>

<mosaic_0001>
module attributes {stable_mosaic.version = 11 : i64} {
  func.func @_fused_kernel(%arg0: i32, %arg1: memref<4x128xf32, #tpu.memory_space<vmem>>, %arg2: memref<1x32xf32, #tpu.memory_space<vmem>>, %arg3: memref<1x32xf32, #tpu.memory_space<vmem>>, %arg4: memref<4x128xf32, #tpu.memory_space<vmem>>) attributes {dimension_semantics = [#tpu.dimension_semantics<arbitrary>], iteration_bounds = array<i64: 1>, scalar_prefetch = 0 : i64, scratch_operands = 0 : i64, tpu.core_type = #tpu.core_type<tc>, window_params = [{pipeline_mode = #tpu.pipeline_mode<synchronous>, transform_indices = @transform_0, window_bounds = array<i64: 4, 128>}, {pipeline_mode = #tpu.pipeline_mode<synchronous>, transform_indices = @transform_1, window_bounds = array<i64: 1, 32>}, {pipeline_mode = #tpu.pipeline_mode<synchronous>, transform_indices = @transform_2, window_bounds = array<i64: 1, 32>}, {pipeline_mode = #tpu.pipeline_mode<synchronous>, transform_indices = @transform_3, window_bounds = array<i64: 4, 128>}]} {
    %c0 = arith.constant 0 : index
    %c0_0 = arith.constant 0 : index
    %0 = vector.load %arg1[%c0, %c0_0] : memref<4x128xf32, #tpu.memory_space<vmem>>, vector<4x128xf32>
    %cst = arith.constant dense<0.000000e+00> : vector<128xf32>
    %1 = vector.multi_reduction <add>, %0, %cst [0] : vector<4x128xf32> to vector<128xf32>
    %2 = vector.shape_cast %1 : vector<128xf32> to vector<1x128xf32>
    %3 = arith.mulf %0, %0 : vector<4x128xf32>
    %cst_1 = arith.constant dense<0.000000e+00> : vector<128xf32>
    %4 = vector.multi_reduction <add>, %3, %cst_1 [0] : vector<4x128xf32> to vector<128xf32>
    %5 = vector.shape_cast %4 : vector<128xf32> to vector<1x128xf32>
    %6 = vector.extract_strided_slice %2 {offsets = [0, 0], sizes = [1, 32], strides = [1, 1]} : vector<1x128xf32> to vector<1x32xf32>
    %7 = vector.extract_strided_slice %5 {offsets = [0, 0], sizes = [1, 32], strides = [1, 1]} : vector<1x128xf32> to vector<1x32xf32>
    %8 = vector.extract_strided_slice %2 {offsets = [0, 32], sizes = [1, 32], strides = [1, 1]} : vector<1x128xf32> to vector<1x32xf32>
    %9 = arith.addf %6, %8 : vector<1x32xf32>
    %10 = vector.extract_strided_slice %5 {offsets = [0, 32], sizes = [1, 32], strides = [1, 1]} : vector<1x128xf32> to vector<1x32xf32>
    %11 = arith.addf %7, %10 : vector<1x32xf32>
    %12 = vector.extract_strided_slice %2 {offsets = [0, 64], sizes = [1, 32], strides = [1, 1]} : vector<1x128xf32> to vector<1x32xf32>
    %13 = arith.addf %9, %12 : vector<1x32xf32>
    %14 = vector.extract_strided_slice %5 {offsets = [0, 64], sizes = [1, 32], strides = [1, 1]} : vector<1x128xf32> to vector<1x32xf32>
    %15 = arith.addf %11, %14 : vector<1x32xf32>
    %16 = vector.extract_strided_slice %2 {offsets = [0, 96], sizes = [1, 32], strides = [1, 1]} : vector<1x128xf32> to vector<1x32xf32>
    %17 = arith.addf %13, %16 : vector<1x32xf32>
    %18 = vector.extract_strided_slice %5 {offsets = [0, 96], sizes = [1, 32], strides = [1, 1]} : vector<1x128xf32> to vector<1x32xf32>
    %19 = arith.addf %15, %18 : vector<1x32xf32>
    %cst_2 = arith.constant 6.250000e-02 : f32
    %20 = vector.broadcast %cst_2 : f32 to vector<1x32xf32>
    %21 = arith.mulf %17, %20 : vector<1x32xf32>
    %cst_3 = arith.constant 6.250000e-02 : f32
    %22 = vector.broadcast %cst_3 : f32 to vector<1x32xf32>
    %23 = arith.mulf %19, %22 : vector<1x32xf32>
    %24 = arith.mulf %21, %21 : vector<1x32xf32>
    %25 = arith.subf %23, %24 : vector<1x32xf32>
    %cst_4 = arith.constant 0.000000e+00 : f32
    %26 = vector.broadcast %cst_4 : f32 to vector<1x32xf32>
    %27 = arith.maximumf %25, %26 : vector<1x32xf32>
    %cst_5 = arith.constant 9.99999974E-6 : f32
    %28 = vector.broadcast %cst_5 : f32 to vector<1x32xf32>
    %29 = arith.addf %27, %28 : vector<1x32xf32>
    %30 = math.rsqrt %29 : vector<1x32xf32>
    %c0_6 = arith.constant 0 : index
    %c0_7 = arith.constant 0 : index
    %31 = vector.load %arg2[%c0_6, %c0_7] : memref<1x32xf32, #tpu.memory_space<vmem>>, vector<1x32xf32>
    %32 = arith.mulf %31, %30 : vector<1x32xf32>
    %c0_8 = arith.constant 0 : index
    %c0_9 = arith.constant 0 : index
    %33 = vector.load %arg3[%c0_8, %c0_9] : memref<1x32xf32, #tpu.memory_space<vmem>>, vector<1x32xf32>
    %34 = arith.mulf %21, %32 : vector<1x32xf32>
    %35 = arith.subf %33, %34 : vector<1x32xf32>
    %36 = tpu.concatenate %32, %32, %32, %32 in 1 : vector<1x32xf32>, vector<1x32xf32>, vector<1x32xf32>, vector<1x32xf32> -> vector<1x128xf32>
    %37 = tpu.concatenate %35, %35, %35, %35 in 1 : vector<1x32xf32>, vector<1x32xf32>, vector<1x32xf32>, vector<1x32xf32> -> vector<1x128xf32>
    %38 = vector.broadcast %36 : vector<1x128xf32> to vector<4x128xf32>
    %39 = arith.mulf %0, %38 : vector<4x128xf32>
    %40 = vector.broadcast %37 : vector<1x128xf32> to vector<4x128xf32>
    %41 = arith.addf %39, %40 : vector<4x128xf32>
    %c0_10 = arith.constant 0 : index
    %c0_11 = arith.constant 0 : index
    %42 = vector.load %arg4[%c0_10, %c0_11] : memref<4x128xf32, #tpu.memory_space<vmem>>, vector<4x128xf32>
    tpu.vector_store %arg4[%c0_10, %c0_11], %41 {strides = array<i32>} : memref<4x128xf32, #tpu.memory_space<vmem>>, vector<4x128xf32>,
    return
  }
  func.func @transform_0(%arg0: i32) -> (i32, i32) {
    %c0_i32 = arith.constant 0 : i32
    %c0_i32_0 = arith.constant 0 : i32
    %c0_i32_1 = arith.constant 0 : i32
    return %c0_i32, %c0_i32_0 : i32, i32
  }
  func.func @transform_1(%arg0: i32) -> (i32, i32) {
    %c0_i32 = arith.constant 0 : i32
    %c0_i32_0 = arith.constant 0 : i32
    %c0_i32_1 = arith.constant 0 : i32
    return %c0_i32, %c0_i32_0 : i32, i32
  }
  func.func @transform_2(%arg0: i32) -> (i32, i32) {
    %c0_i32 = arith.constant 0 : i32
    %c0_i32_0 = arith.constant 0 : i32
    %c0_i32_1 = arith.constant 0 : i32
    return %c0_i32, %c0_i32_0 : i32, i32
  }
  func.func @transform_3(%arg0: i32) -> (i32, i32) {
    %c0_i32 = arith.constant 0 : i32
    %c0_i32_0 = arith.constant 0 : i32
    %c0_i32_1 = arith.constant 0 : i32
    return %c0_i32, %c0_i32_0 : i32, i32
  }
}

</mosaic_0001>

<llo_original>
// kernel: batch_norm_1d_pallas.1
$region0: #{batch_norm_1d_pallas.1}
  #allocation0 [shape = 'u32[]', space=smem, size = 0x4, offset = 0x4, fixed_abs, tag = 'smem constant byte address 0x4 - core index']
  #allocation1 [shape = 'u32[144,128]{1,0:T(1,128)}', space=vmem, size = 0x12000, scoped, tag = 'internal scratch']
  %s0 = inlined_call_operand.vmem [shape: f32[4,128], index: 0, kind: input, shape index: {}]
  %s1 = inlined_call_operand.vmem [shape: f32[1,32], index: 1, kind: input, shape index: {}]
  %s2 = inlined_call_operand.vmem [shape: f32[1,32], index: 2, kind: input, shape index: {}]
  %s3 = inlined_call_operand.vmem [shape: f32[4,128], index: 3, kind: output, shape index: {}]
  %s4 = sld [smem:[#allocation0]]
  $region22: #{batch_norm_1d_pallas.1} parent=0
    _
  %s6 = ssub.s32 1, %s4
  %s7 = scalar_select 0, %s6, %s4
  // Predicated region
  $region2: #{batch_norm_1d_pallas.1} parent=0 // pred_check
    _
  $region3: #{batch_norm_1d_pallas.1} parent=0 // pred_check_branch
    %9 = sbr.rel (0) target = $region5
  $region4: #{batch_norm_1d_pallas.1} parent=0 // pred_region
    _
  $region5: #{batch_norm_1d_pallas.1} parent=0 // pred_fallthru
    _
  // Predicated region
  $region6: #{batch_norm_1d_pallas.1} parent=0 // pred_check
    _
  $region7: #{batch_norm_1d_pallas.1} parent=0 // pred_check_branch
    %11 = sbr.rel (0) target = $region9
  $region8: #{batch_norm_1d_pallas.1} parent=0 // pred_region
    _
  $region9: #{batch_norm_1d_pallas.1} parent=0 // pred_fallthru
    _
  // Predicated region
  $region10: #{batch_norm_1d_pallas.1} parent=0 // pred_check
    _
  $region11: #{batch_norm_1d_pallas.1} parent=0 // pred_check_branch
    %13 = sbr.rel (0) target = $region13
  $region12: #{batch_norm_1d_pallas.1} parent=0 // pred_region
    _
  $region13: #{batch_norm_1d_pallas.1} parent=0 // pred_fallthru
    _
  %v14 = vld [vmem:[%s0] sm:$0xf]
  %vm15 = vcmask 1043456
  %v16 = vsel %vm15, %v14, 0.0
  %v17 = vrot.slane %v16, 4
  %v18 = vadd.f32 %v16, %v17
  %v19 = vrot.slane %v18, 2
  %v20 = vadd.f32 %v18, %v19
  %v21 = vrot.slane %v20, 1
  %v22 = vadd.f32 %v20, %v21
  %v23 = vmul.f32 %v14, %v14
  %v24 = vsel %vm15, %v23, 0.0
  %v25 = vrot.slane %v24, 4
  %v26 = vadd.f32 %v24, %v25
  %v27 = vrot.slane %v26, 2
  %v28 = vadd.f32 %v26, %v27
  %v29 = vrot.slane %v28, 1
  %v30 = vadd.f32 %v28, %v29
  %32 = vrot.lane.b32.xlu0 %v22, 96
  %v33 = vpop.permute.xlu0 %32
  %v35 = vadd.f32 %v22, %v33
  %37 = vrot.lane.b32.xlu0 %v30, 96
  %v38 = vpop.permute.xlu0 %37
  %v40 = vadd.f32 %v30, %v38
  %41 = vrot.lane.b32.xlu0 %v22, 64
  %v42 = vpop.permute.xlu0 %41
  %v44 = vadd.f32 %v35, %v42
  %45 = vrot.lane.b32.xlu0 %v30, 64
  %v46 = vpop.permute.xlu0 %45
  %v48 = vadd.f32 %v40, %v46
  %49 = vrot.lane.b32.xlu0 %v22, 32
  %v50 = vpop.permute.xlu0 %49
  %v52 = vadd.f32 %v44, %v50
  %53 = vrot.lane.b32.xlu0 %v30, 32
  %v54 = vpop.permute.xlu0 %53
  %v56 = vadd.f32 %v48, %v54
  %v57 = vmul.f32 %v52, 0.0625
  %v58 = vmul.f32 %v56, 0.0625
  %v59 = vmul.f32 %v57, %v57
  %v60 = vsub.f32 %v58, %v59
  %v61 = vmax.f32 %v60, 0.0
  %v62 = vadd.f32 %v61, 1e-05
  %v63 = vrsqrt.pop %v62
  %v64 = vld [vmem:[%s1] sm:$0x1]
  %v65 = vmul.f32 %v64, %v63
  %v66 = vld [vmem:[%s2] sm:$0x1]
  %v67 = vmul.f32 %v57, %v65
  %v68 = vsub.f32 %v66, %v67
  %v70 = vlaneseq
  %v71 = vshrl.u32 %v70, 7
  %v72 = vsub.s32 0, %v71
  %v73 = vrot.slane %v65, %v72
  %74 = vrot.lane.b32.xlu0 %v73, 32
  %v75 = vpop.permute.xlu0 %74
  %77 = vrot.lane.b32.xlu0 %v73, 64
  %v78 = vpop.permute.xlu0 %77
  %80 = vrot.lane.b32.xlu0 %v73, 96
  %v81 = vpop.permute.xlu0 %80
  %vm83 = vcmask 261120
  %v84 = vsel %vm83, %v65, %v75
  %vm85 = vcmask 523264
  %v86 = vsel %vm85, %v84, %v78
  %vm87 = vcmask 785408
  %v88 = vsel %vm87, %v86, %v81
  %v90 = vlaneseq
  %v91 = vshrl.u32 %v90, 7
  %v92 = vsub.s32 0, %v91
  %v93 = vrot.slane %v68, %v92
  %94 = vrot.lane.b32.xlu0 %v93, 32
  %v95 = vpop.permute.xlu0 %94
  %97 = vrot.lane.b32.xlu0 %v93, 64
  %v98 = vpop.permute.xlu0 %97
  %100 = vrot.lane.b32.xlu0 %v93, 96
  %v101 = vpop.permute.xlu0 %100
  %v103 = vsel %vm83, %v68, %v95
  %v104 = vsel %vm85, %v103, %v98
  %v105 = vsel %vm87, %v104, %v101
  %v106 = vlaneseq
  %v107 = vshrl.u32 %v106, 7
  %v108 = vsub.s32 0, %v107
  %v109 = vrot.slane %v88, %v108
  %v110 = vmul.f32 %v14, %v109
  %v111 = vlaneseq
  %v112 = vshrl.u32 %v111, 7
  %v113 = vsub.s32 0, %v112
  %v114 = vrot.slane %v105, %v113
  %v115 = vadd.f32 %v110, %v114
  %116 = vst [vmem:[%s3] sm:$0xf] %v115
  // Predicated region
  $region14: #{batch_norm_1d_pallas.1} parent=0 // pred_check
    _
  $region15: #{batch_norm_1d_pallas.1} parent=0 // pred_check_branch
    %118 = sbr.rel (0) target = $region17
  $region16: #{batch_norm_1d_pallas.1} parent=0 // pred_region
    _
  $region17: #{batch_norm_1d_pallas.1} parent=0 // pred_fallthru
    _
  // Predicated region
  $region18: #{batch_norm_1d_pallas.1} parent=0 // pred_check
    _
  $region19: #{batch_norm_1d_pallas.1} parent=0 // pred_check_branch
    %120 = sbr.rel (0) target = $region21
  $region20: #{batch_norm_1d_pallas.1} parent=0 // pred_region
    _
  $region21: #{batch_norm_1d_pallas.1} parent=0 // pred_fallthru
    _

</llo_original>
